<compile_context>
chip_gen: v5e
topology: v5e:2x2
jax: 0.10.0
libtpu: 0.0.40
codegen_flags: <defaults>
</compile_context>

<pallas_src>
import functools

import jax
import jax.numpy as jnp
from jax.experimental import pallas as pl
from jax.experimental.pallas import tpu as pltpu


def _gat_stack_kernel(x_ref, w_ref, asrc_ref, adst_ref, b_ref, adj_ref, o_ref,
                      x_scr, h_scr, asrc_row_scr, adst_col_scr, out_stage,
                      *, num_layers, tile_m):
    layer = pl.program_id(0)   # outer grid axis: layer index (sequential)
    tile = pl.program_id(1)    # inner grid axis: destination-row tile

    # Load the (zero-padded, bf16) input node features into resident scratch
    # exactly once.  x is memory_space=ANY, so no double-buffered window is
    # wasted on a read-once array; this is a single manual HBM->VMEM DMA.
    @pl.when(jnp.logical_and(layer == 0, tile == 0))
    def _():
        pltpu.sync_copy(x_ref, x_scr)

    # Once per layer: h = x @ W (bf16 MXU operands, f32 accumulation) plus the
    # per-source logit row a_src[1, N] and per-dest logit column a_dst[N, 1].
    @pl.when(tile == 0)
    def _():
        h = jnp.dot(x_scr[...], w_ref[...],
                    preferred_element_type=jnp.float32)            # [N, C] f32
        h_scr[...] = h.astype(jnp.bfloat16)                        # bf16 residency
        asrc_row_scr[...] = jax.lax.dot_general(
            asrc_ref[...], h,
            dimension_numbers=(((1,), (1,)), ((), ())),
            preferred_element_type=jnp.float32)                    # [1, N]
        adst_col_scr[...] = jnp.sum(h * adst_ref[...], axis=-1,
                                    keepdims=True)                 # [N, 1]

    # ---- per destination-row tile ----
    row0 = pl.multiple_of(tile * tile_m, tile_m)
    a_dst = adst_col_scr[pl.ds(row0, tile_m), :]                   # [tm, 1]

    # edge logits, leaky_relu(0.2), mask as a single compare+select.
    e = a_dst + asrc_row_scr[...]                                  # [tm, N]
    e = jnp.where(e > 0, e, 0.2 * e)
    e = jnp.where(adj_ref[...] != 0, e, -1e30)
    # NOTE: a row with no edges and no self-loop would degrade to a uniform
    # softmax here; GATConv's default add_self_loops=True (enforced by the
    # wrapper/test) guarantees at least one valid entry per row.

    # masked softmax numerator; exp(-1e30 - max) underflows to 0, and the
    # normalization is deferred until AFTER the aggregation matmul so the
    # divide touches [tm, C] instead of [tm, N].
    e = e - jnp.max(e, axis=-1, keepdims=True)
    p = jnp.exp(e)
    denom = jnp.sum(p, axis=-1, keepdims=True)

    agg = jnp.dot(p.astype(jnp.bfloat16), h_scr[...],
                  preferred_element_type=jnp.float32)              # [tm, C]
    out = agg * pl.reciprocal(denom, approx=True) + b_ref[...]

    # Non-last layers: fused ReLU, write back into the resident feature
    # scratch (input of the next layer).  Eval-mode dropout is identity.
    @pl.when(layer < num_layers - 1)
    def _():
        x_scr[pl.ds(row0, tile_m), :] = jnp.maximum(out, 0.0).astype(jnp.bfloat16)

    # Last layer only: DMA the f32 result tile straight to the HBM output.
    # Intermediate layers never write activations to HBM.
    @pl.when(layer == num_layers - 1)
    def _():
        out_stage[...] = out
        pltpu.sync_copy(out_stage, o_ref.at[pl.ds(row0, tile_m), :])


def gat_forward_pallas(x, adj, params, *, tile_m=128, c_pad=128):
    """Full GAT forward (all GATConv layers fused into one pallas_call)."""
    N, c_in = x.shape
    L = len(params)
    c_out_final = params[-1][0].shape[1]

    tile_m = min(tile_m, N)
    assert N % tile_m == 0 and tile_m % 32 == 0, "need N % tile_m == 0, tile_m % 32 == 0"
    assert adj.shape == (N, N)
    assert max([c_in] + [w.shape[1] for (w, _, _, _) in params]) <= c_pad

    # Zero-pad parameters to a common 128-lane channel width and stack per
    # layer.  W is pre-cast to bf16 on the host (MXU operand dtype); the small
    # attention/bias vectors stay f32 for the f32 logit math.
    w_all = jnp.zeros((L, c_pad, c_pad), jnp.bfloat16)
    asrc_all = jnp.zeros((L, 1, c_pad), jnp.float32)
    adst_all = jnp.zeros((L, 1, c_pad), jnp.float32)
    b_all = jnp.zeros((L, 1, c_pad), jnp.float32)
    for li, (w, a_s, a_d, b) in enumerate(params):
        cin, cout = w.shape
        w_all = w_all.at[li, :cin, :cout].set(w.astype(jnp.bfloat16))
        asrc_all = asrc_all.at[li, :, :cout].set(a_s)
        adst_all = adst_all.at[li, :, :cout].set(a_d)
        b_all = b_all.at[li, :, :cout].set(b)

    x_pad = jnp.zeros((N, c_pad), jnp.bfloat16).at[:, :c_in].set(x.astype(jnp.bfloat16))
    adj_i8 = adj.astype(jnp.int8)

    n_tiles = N // tile_m
    kernel = functools.partial(_gat_stack_kernel, num_layers=L, tile_m=tile_m)

    out = pl.pallas_call(
        kernel,
        out_shape=jax.ShapeDtypeStruct((N, c_pad), jnp.float32),
        grid_spec=pltpu.PrefetchScalarGridSpec(
            num_scalar_prefetch=0,
            grid=(L, n_tiles),
            in_specs=[
                pl.BlockSpec(memory_space=pl.ANY),                           # x (manual DMA once)
                pl.BlockSpec((None, c_pad, c_pad), lambda l, t: (l, 0, 0)),  # W_l (bf16)
                pl.BlockSpec((None, 1, c_pad), lambda l, t: (l, 0, 0)),      # att_src_l
                pl.BlockSpec((None, 1, c_pad), lambda l, t: (l, 0, 0)),      # att_dst_l
                pl.BlockSpec((None, 1, c_pad), lambda l, t: (l, 0, 0)),      # bias_l
                pl.BlockSpec((tile_m, N), lambda l, t: (t, 0)),              # adj rows (int8)
            ],
            out_specs=pl.BlockSpec(memory_space=pl.ANY),                     # manual DMA, last layer only
            scratch_shapes=[
                pltpu.VMEM((N, c_pad), jnp.bfloat16),      # node features (layer input/output)
                pltpu.VMEM((N, c_pad), jnp.bfloat16),      # h = x @ W for the current layer
                pltpu.VMEM((1, N), jnp.float32),           # a_src logits (row)
                pltpu.VMEM((N, 1), jnp.float32),           # a_dst logits (column)
                pltpu.VMEM((tile_m, c_pad), jnp.float32),  # f32 output staging tile
            ],
        ),
        compiler_params=pltpu.CompilerParams(
            # Both axes carry state through VMEM scratch (layer -> layer, and
            # h computed at tile 0 reused by later tiles) -> "arbitrary".
            dimension_semantics=("arbitrary", "arbitrary"),
            # Fits comfortably inside v7x's 64 MiB physical VMEM; can be
            # raised toward ~100 MiB on v5e/v6e for larger graphs / tile_m.
            vmem_limit_bytes=32 * 1024 * 1024,
        ),
    )(x_pad, w_all, asrc_all, adst_all, b_all, adj_i8)

    return out[:, :c_out_final]


# ---------------------------------------------------------------------------
# Pure-JAX f32 reference (same math) for a correctness check.
# ---------------------------------------------------------------------------
def gat_forward_ref(x, adj, params):
    n_layers = len(params)
    for li, (w, a_s, a_d, b) in enumerate(params):
        h = x @ w
        a_dst = jnp.sum(h * a_d, axis=-1, keepdims=True)          # [N,1]
        a_src = jnp.sum(h * a_s, axis=-1, keepdims=True)          # [N,1]
        e = a_dst + a_src.T
        e = jnp.where(e > 0, e, 0.2 * e)
        mask = adj > 0
        e = jnp.where(mask, e, -1e30)
        e = e - jnp.max(e, axis=-1, keepdims=True)
        p = jnp.where(mask, jnp.exp(e), 0.0)
        alpha = p / jnp.sum(p, axis=-1, keepdims=True)
        x = alpha @ h + b
        if li < n_layers - 1:
            x = jnp.maximum(x, 0.0)
    return x


def make_params(key, in_channels, hidden_channels, out_channels, num_layers):
    """Deterministic synthetic parameters with GATConv-like shapes."""
    dims = ([in_channels] + [hidden_channels] * (num_layers - 1) + [out_channels])
    params = []
    for li in range(num_layers):
        cin, cout = dims[li], dims[li + 1]
        key, k1, k2, k3 = jax.random.split(key, 4)
        w = jax.random.normal(k1, (cin, cout), jnp.float32) * (1.0 / jnp.sqrt(cin))
        a_s = jax.random.normal(k2, (1, cout), jnp.float32) * 0.1
        a_d = jax.random.normal(k3, (1, cout), jnp.float32) * 0.1
        b = jnp.zeros((1, cout), jnp.float32)
        params.append((w, a_s, a_d, b))
    return params


if __name__ == "__main__":
    key = jax.random.PRNGKey(0)

    # Small, forward-consistent shapes.
    N = 64                 # number of graph nodes
    E = 256                # number of directed edges
    in_channels, hidden_channels, out_channels = 16, 32, 8
    num_layers = 3
    dropout = 0.5          # identity in eval mode

    k_x, k_src, k_dst, k_p = jax.random.split(key, 4)
    x = jax.random.normal(k_x, (N, in_channels), jnp.float32)
    src = jax.random.randint(k_src, (E,), 0, N)
    dst = jax.random.randint(k_dst, (E,), 0, N)

    # Dense adjacency mask adj[dst, src] = 1 (int8), plus self-loops
    # (GATConv default add_self_loops=True; required for a valid softmax row).
    adj = jnp.zeros((N, N), jnp.int8).at[dst, src].set(1)
    adj = jnp.maximum(adj, jnp.eye(N, dtype=jnp.int8))

    params = make_params(k_p, in_channels, hidden_channels, out_channels, num_layers)

    out = gat_forward_pallas(x, adj, params)
    out = jax.block_until_ready(out)

    ref = gat_forward_ref(x, adj, params)
    assert out.shape == (N, out_channels)
    # bf16 MXU operands / bf16 inter-layer residency + approx reciprocal =>
    # small numeric drift vs the f32 reference; outputs are O(1), so this
    # tolerance still catches real bugs.
    assert jnp.allclose(out, ref, rtol=5e-2, atol=5e-2), "mismatch vs reference"

    print("KERNEL_OK")
</pallas_src>

<mosaic_0001>
module attributes {stable_mosaic.version = 11 : i64} {
  func.func @_gat_stack_kernel(%arg0: i32, %arg1: i32, %arg2: memref<64x128xbf16, #tpu.memory_space<any>>, %arg3: memref<1x128x128xbf16, #tpu.memory_space<vmem>>, %arg4: memref<1x1x128xf32, #tpu.memory_space<vmem>>, %arg5: memref<1x1x128xf32, #tpu.memory_space<vmem>>, %arg6: memref<1x1x128xf32, #tpu.memory_space<vmem>>, %arg7: memref<64x64xi8, #tpu.memory_space<vmem>>, %arg8: memref<64x128xf32, #tpu.memory_space<any>>, %arg9: memref<64x128xbf16, #tpu.memory_space<vmem>>, %arg10: memref<64x128xbf16, #tpu.memory_space<vmem>>, %arg11: memref<1x64xf32, #tpu.memory_space<vmem>>, %arg12: memref<64x1xf32, #tpu.memory_space<vmem>>, %arg13: memref<64x128xf32, #tpu.memory_space<vmem>>) attributes {dimension_semantics = [#tpu.dimension_semantics<arbitrary>, #tpu.dimension_semantics<arbitrary>], iteration_bounds = array<i64: 3, 1>, scalar_prefetch = 0 : i64, scratch_operands = 5 : i64, tpu.core_type = #tpu.core_type<tc>, window_params = [{}, {transform_indices = @transform_1, window_bounds = array<i64: 1, 128, 128>}, {transform_indices = @transform_2, window_bounds = array<i64: 1, 1, 128>}, {transform_indices = @transform_3, window_bounds = array<i64: 1, 1, 128>}, {transform_indices = @transform_4, window_bounds = array<i64: 1, 1, 128>}, {transform_indices = @transform_5, window_bounds = array<i64: 64, 64>}, {}]} {
    %c0_i32 = arith.constant 0 : i32
    %0 = arith.cmpi eq, %arg0, %c0_i32 : i32
    %c0_i32_0 = arith.constant 0 : i32
    %1 = arith.cmpi eq, %arg1, %c0_i32_0 : i32
    %2 = arith.andi %0, %1 : i1
    %3 = arith.extui %2 : i1 to i32
    %c0_i32_1 = arith.constant 0 : i32
    %4 = arith.cmpi ne, %3, %c0_i32_1 : i32
    scf.if %4 {
      "tpu.region"() ({
        %49 = tpu.sem_alloc : memref<!tpu.dma_semaphore, #tpu.memory_space<semaphore_mem>>
        tpu.enqueue_dma source(%arg2 : memref<64x128xbf16, #tpu.memory_space<any>>) target(%arg9 : memref<64x128xbf16, #tpu.memory_space<vmem>>) target_semaphore(%49 : memref<!tpu.dma_semaphore, #tpu.memory_space<semaphore_mem>>)
        tpu.wait_dma2 semaphore(%49 : memref<!tpu.dma_semaphore, #tpu.memory_space<semaphore_mem>>) src(%arg2 : memref<64x128xbf16, #tpu.memory_space<any>>) dst(%arg9 : memref<64x128xbf16, #tpu.memory_space<vmem>>)
        tpu.yield
      }) : () -> ()
    } else {
    }
    %c0_i32_2 = arith.constant 0 : i32
    %5 = arith.cmpi eq, %arg1, %c0_i32_2 : i32
    %6 = arith.extui %5 : i1 to i32
    %c0_i32_3 = arith.constant 0 : i32
    %7 = arith.cmpi ne, %6, %c0_i32_3 : i32
    scf.if %7 {
      %c0_21 = arith.constant 0 : index
      %c0_22 = arith.constant 0 : index
      %49 = vector.load %arg9[%c0_21, %c0_22] : memref<64x128xbf16, #tpu.memory_space<vmem>>, vector<64x128xbf16>
      %c0_23 = arith.constant 0 : index
      %c0_24 = arith.constant 0 : index
      %c0_25 = arith.constant 0 : index
      %50 = vector.load %arg3[%c0_23, %c0_24, %c0_25] : memref<1x128x128xbf16, #tpu.memory_space<vmem>>, vector<1x128x128xbf16>
      %51 = vector.shape_cast %50 : vector<1x128x128xbf16> to vector<128x128xbf16>
      %cst_26 = arith.constant dense<0.000000e+00> : vector<64x128xf32>
      %52 = tpu.matmul %49, %51, %cst_26 {dimension_numbers = #tpu.dot_dimension_numbers<[1], [0], [0], [1], [0, 0, 1, 1], [], []>} : vector<64x128xbf16>, vector<128x128xbf16>, vector<64x128xf32> -> vector<64x128xf32>
      %53 = arith.truncf %52 : vector<64x128xf32> to vector<64x128xbf16>
      %c0_27 = arith.constant 0 : index
      %c0_28 = arith.constant 0 : index
      %54 = vector.load %arg10[%c0_27, %c0_28] : memref<64x128xbf16, #tpu.memory_space<vmem>>, vector<64x128xbf16>
      tpu.vector_store %arg10[%c0_27, %c0_28], %53 {strides = array<i32>} : memref<64x128xbf16, #tpu.memory_space<vmem>>, vector<64x128xbf16>,
      %c0_29 = arith.constant 0 : index
      %c0_30 = arith.constant 0 : index
      %c0_31 = arith.constant 0 : index
      %55 = vector.load %arg4[%c0_29, %c0_30, %c0_31] : memref<1x1x128xf32, #tpu.memory_space<vmem>>, vector<1x1x128xf32>
      %56 = vector.shape_cast %55 : vector<1x1x128xf32> to vector<1x128xf32>
      %cst_32 = arith.constant dense<0.000000e+00> : vector<1x64xf32>
      %57 = tpu.matmul %56, %52, %cst_32 {dimension_numbers = #tpu.dot_dimension_numbers<[1], [1], [0], [0], [0, 0, 1, 0], [], []>} : vector<1x128xf32>, vector<64x128xf32>, vector<1x64xf32> -> vector<1x64xf32>
      %c0_33 = arith.constant 0 : index
      %c0_34 = arith.constant 0 : index
      %58 = vector.load %arg11[%c0_33, %c0_34] : memref<1x64xf32, #tpu.memory_space<vmem>>, vector<1x64xf32>
      tpu.vector_store %arg11[%c0_33, %c0_34], %57 {strides = array<i32>} : memref<1x64xf32, #tpu.memory_space<vmem>>, vector<1x64xf32>,
      %c0_35 = arith.constant 0 : index
      %c0_36 = arith.constant 0 : index
      %c0_37 = arith.constant 0 : index
      %59 = vector.load %arg5[%c0_35, %c0_36, %c0_37] : memref<1x1x128xf32, #tpu.memory_space<vmem>>, vector<1x1x128xf32>
      %60 = vector.shape_cast %59 : vector<1x1x128xf32> to vector<1x128xf32>
      %61 = vector.broadcast %60 : vector<1x128xf32> to vector<64x128xf32>
      %62 = arith.mulf %52, %61 : vector<64x128xf32>
      %cst_38 = arith.constant dense<0.000000e+00> : vector<64xf32>
      %63 = vector.multi_reduction <add>, %62, %cst_38 [1] : vector<64x128xf32> to vector<64xf32>
      %64 = vector.shape_cast %63 : vector<64xf32> to vector<64x1xf32>
      %c0_39 = arith.constant 0 : index
      %c0_40 = arith.constant 0 : index
      %65 = vector.load %arg12[%c0_39, %c0_40] : memref<64x1xf32, #tpu.memory_space<vmem>>, vector<64x1xf32>
      tpu.vector_store %arg12[%c0_39, %c0_40], %64 {strides = array<i32>} : memref<64x1xf32, #tpu.memory_space<vmem>>, vector<64x1xf32>,
    } else {
    }
    %c64_i32 = arith.constant 64 : i32
    %8 = arith.muli %arg1, %c64_i32 : i32
    %9 = tpu.assume_multiple %8, 64 : i32
    %10 = arith.index_cast %9 : i32 to index
    %c0 = arith.constant 0 : index
    %11 = vector.load %arg12[%10, %c0] : memref<64x1xf32, #tpu.memory_space<vmem>>, vector<64x1xf32>
    %c0_4 = arith.constant 0 : index
    %c0_5 = arith.constant 0 : index
    %12 = vector.load %arg11[%c0_4, %c0_5] : memref<1x64xf32, #tpu.memory_space<vmem>>, vector<1x64xf32>
    %13 = vector.broadcast %11 : vector<64x1xf32> to vector<64x64xf32>
    %14 = vector.broadcast %12 : vector<1x64xf32> to vector<64x64xf32>
    %15 = arith.addf %13, %14 : vector<64x64xf32>
    %cst = arith.constant 0.000000e+00 : f32
    %16 = vector.broadcast %cst : f32 to vector<64x64xf32>
    %17 = arith.cmpf ogt, %15, %16 : vector<64x64xf32>
    %cst_6 = arith.constant 2.000000e-01 : f32
    %18 = vector.broadcast %cst_6 : f32 to vector<64x64xf32>
    %19 = arith.mulf %18, %15 : vector<64x64xf32>
    %20 = arith.select %17, %15, %19 : vector<64x64xi1>, vector<64x64xf32>
    %c0_7 = arith.constant 0 : index
    %c0_8 = arith.constant 0 : index
    %21 = vector.load %arg7[%c0_7, %c0_8] : memref<64x64xi8, #tpu.memory_space<vmem>>, vector<64x64xi8>
    %c0_i8 = arith.constant 0 : i8
    %22 = vector.broadcast %c0_i8 : i8 to vector<64x64xi8>
    %23 = arith.cmpi ne, %21, %22 : vector<64x64xi8>
    %cst_9 = arith.constant -1.000000e+30 : f32
    %24 = vector.broadcast %cst_9 : f32 to vector<64x64xf32>
    %25 = arith.select %23, %20, %24 : vector<64x64xi1>, vector<64x64xf32>
    %cst_10 = arith.constant dense<0xFF800000> : vector<64xf32>
    %26 = vector.multi_reduction <maximumf>, %25, %cst_10 [1] : vector<64x64xf32> to vector<64xf32>
    %27 = vector.shape_cast %26 : vector<64xf32> to vector<64x1xf32>
    %28 = vector.broadcast %27 : vector<64x1xf32> to vector<64x64xf32>
    %29 = arith.subf %25, %28 : vector<64x64xf32>
    %30 = math.exp %29 : vector<64x64xf32>
    %cst_11 = arith.constant dense<0.000000e+00> : vector<64xf32>
    %31 = vector.multi_reduction <add>, %30, %cst_11 [1] : vector<64x64xf32> to vector<64xf32>
    %32 = vector.shape_cast %31 : vector<64xf32> to vector<64x1xf32>
    %33 = arith.truncf %30 : vector<64x64xf32> to vector<64x64xbf16>
    %c0_12 = arith.constant 0 : index
    %c0_13 = arith.constant 0 : index
    %34 = vector.load %arg10[%c0_12, %c0_13] : memref<64x128xbf16, #tpu.memory_space<vmem>>, vector<64x128xbf16>
    %cst_14 = arith.constant dense<0.000000e+00> : vector<64x128xf32>
    %35 = tpu.matmul %33, %34, %cst_14 {dimension_numbers = #tpu.dot_dimension_numbers<[1], [0], [0], [1], [0, 0, 1, 1], [], []>} : vector<64x64xbf16>, vector<64x128xbf16>, vector<64x128xf32> -> vector<64x128xf32>
    %36 = tpu.reciprocal %32 {approx = true} : vector<64x1xf32> -> vector<64x1xf32>
    %37 = vector.broadcast %36 : vector<64x1xf32> to vector<64x128xf32>
    %38 = arith.mulf %35, %37 : vector<64x128xf32>
    %c0_15 = arith.constant 0 : index
    %c0_16 = arith.constant 0 : index
    %c0_17 = arith.constant 0 : index
    %39 = vector.load %arg6[%c0_15, %c0_16, %c0_17] : memref<1x1x128xf32, #tpu.memory_space<vmem>>, vector<1x1x128xf32>
    %40 = vector.shape_cast %39 : vector<1x1x128xf32> to vector<1x128xf32>
    %41 = vector.broadcast %40 : vector<1x128xf32> to vector<64x128xf32>
    %42 = arith.addf %38, %41 : vector<64x128xf32>
    %c2_i32 = arith.constant 2 : i32
    %43 = arith.cmpi slt, %arg0, %c2_i32 : i32
    %44 = arith.extui %43 : i1 to i32
    %c0_i32_18 = arith.constant 0 : i32
    %45 = arith.cmpi ne, %44, %c0_i32_18 : i32
    scf.if %45 {
      %cst_21 = arith.constant 0.000000e+00 : f32
      %49 = vector.broadcast %cst_21 : f32 to vector<64x128xf32>
      %50 = arith.maximumf %42, %49 : vector<64x128xf32>
      %51 = arith.truncf %50 : vector<64x128xf32> to vector<64x128xbf16>
      %52 = arith.index_cast %9 : i32 to index
      %c0_22 = arith.constant 0 : index
      %53 = vector.load %arg9[%52, %c0_22] : memref<64x128xbf16, #tpu.memory_space<vmem>>, vector<64x128xbf16>
      tpu.vector_store %arg9[%52, %c0_22], %51 {strides = array<i32>} : memref<64x128xbf16, #tpu.memory_space<vmem>>, vector<64x128xbf16>,
    } else {
    }
    %c2_i32_19 = arith.constant 2 : i32
    %46 = arith.cmpi eq, %arg0, %c2_i32_19 : i32
    %47 = arith.extui %46 : i1 to i32
    %c0_i32_20 = arith.constant 0 : i32
    %48 = arith.cmpi ne, %47, %c0_i32_20 : i32
    scf.if %48 {
      %c0_21 = arith.constant 0 : index
      %c0_22 = arith.constant 0 : index
      %49 = vector.load %arg13[%c0_21, %c0_22] : memref<64x128xf32, #tpu.memory_space<vmem>>, vector<64x128xf32>
      tpu.vector_store %arg13[%c0_21, %c0_22], %42 {strides = array<i32>} : memref<64x128xf32, #tpu.memory_space<vmem>>, vector<64x128xf32>,
      "tpu.region"() ({
        %50 = tpu.sem_alloc : memref<!tpu.dma_semaphore, #tpu.memory_space<semaphore_mem>>
        %c0_i32_23 = arith.constant 0 : i32
        %51 = tpu.memref_slice %arg8[%9, %c0_i32_23] : memref<64x128xf32, #tpu.memory_space<any>> -> memref<64x128xf32, #tpu.memory_space<any>>
        tpu.enqueue_dma source(%arg13 : memref<64x128xf32, #tpu.memory_space<vmem>>) target(%51 : memref<64x128xf32, #tpu.memory_space<any>>) target_semaphore(%50 : memref<!tpu.dma_semaphore, #tpu.memory_space<semaphore_mem>>)
        %c0_i32_24 = arith.constant 0 : i32
        %52 = tpu.memref_slice %arg8[%9, %c0_i32_24] : memref<64x128xf32, #tpu.memory_space<any>> -> memref<64x128xf32, #tpu.memory_space<any>>
        tpu.wait_dma2 semaphore(%50 : memref<!tpu.dma_semaphore, #tpu.memory_space<semaphore_mem>>) src(%arg13 : memref<64x128xf32, #tpu.memory_space<vmem>>) dst(%52 : memref<64x128xf32, #tpu.memory_space<any>>)
        tpu.yield
      }) : () -> ()
    } else {
    }
    return
  }
  func.func @transform_1(%arg0: i32, %arg1: i32) -> (i32, i32, i32) {
    %c0_i32 = arith.constant 0 : i32
    %c0_i32_0 = arith.constant 0 : i32
    %c0_i32_1 = arith.constant 0 : i32
    return %arg0, %c0_i32, %c0_i32_0 : i32, i32, i32
  }
  func.func @transform_2(%arg0: i32, %arg1: i32) -> (i32, i32, i32) {
    %c0_i32 = arith.constant 0 : i32
    %c0_i32_0 = arith.constant 0 : i32
    %c0_i32_1 = arith.constant 0 : i32
    return %arg0, %c0_i32, %c0_i32_0 : i32, i32, i32
  }
  func.func @transform_3(%arg0: i32, %arg1: i32) -> (i32, i32, i32) {
    %c0_i32 = arith.constant 0 : i32
    %c0_i32_0 = arith.constant 0 : i32
    %c0_i32_1 = arith.constant 0 : i32
    return %arg0, %c0_i32, %c0_i32_0 : i32, i32, i32
  }
  func.func @transform_4(%arg0: i32, %arg1: i32) -> (i32, i32, i32) {
    %c0_i32 = arith.constant 0 : i32
    %c0_i32_0 = arith.constant 0 : i32
    %c0_i32_1 = arith.constant 0 : i32
    return %arg0, %c0_i32, %c0_i32_0 : i32, i32, i32
  }
  func.func @transform_5(%arg0: i32, %arg1: i32) -> (i32, i32) {
    %c0_i32 = arith.constant 0 : i32
    %c0_i32_0 = arith.constant 0 : i32
    return %arg1, %c0_i32 : i32, i32
  }
}

</mosaic_0001>

<llo_original>
// kernel: tpu_custom_call.1
$region0: #{tpu_custom_call.1}
  #allocation0 [shape = 'u32[]', space=smem, size = 0x4, offset = 0x4, fixed_abs, tag = 'smem constant byte address 0x4 - core index']
  #allocation1 [shape = 'u32[72,128]{1,0:T(1,128)}', space=vmem, size = 0x9000, scoped, tag = 'internal scratch']
  #allocation2 [shape = 'bf16[64,128]{1,0:T(8,128)(2,1)}', space=vmem, size = 0x4000, scoped, tag = 'scratch operand']
  #allocation3 [shape = 'bf16[64,128]{1,0:T(8,128)(2,1)}', space=vmem, size = 0x4000, scoped, tag = 'scratch operand']
  #allocation4 [shape = 'f32[1,64]{1,0:T(1,128)}', space=vmem, size = 0x200, scoped, tag = 'scratch operand']
  #allocation5 [shape = 'f32[64,1]{1,0:T(8,128)}', space=vmem, size = 0x8000, scoped, tag = 'scratch operand']
  #allocation6 [shape = 'f32[64,128]{1,0:T(8,128)}', space=vmem, size = 0x8000, scoped, tag = 'scratch operand']
  #allocation15 [shape = 's32[]', space=sflag, size = 0x4, offset = 0, fixed_abs, tag = 'sflag constant byte address 0x0 - dummy sync flag']
  #allocation16 [shape = 's32[]', space=sflag, size = 0x4, offset = 0, fixed_abs, tag = 'sflag constant byte address 0x0 - dummy sync flag']
  #allocation17 [shape = 'u32[]', space=smem, size = 0x4, offset = 0x44, fixed_abs, tag = 'smem constant byte address 0x44 - assertion arg 0']
  #allocation18 [shape = 'u32[]', space=smem, size = 0x4, offset = 0x48, fixed_abs, tag = 'smem constant byte address 0x48 - assertion arg 1']
  #allocation20 [shape = 's32[]', space=sflag, size = 0x4, offset = 0, fixed_abs, tag = 'sflag constant byte address 0x0 - dummy sync flag']
  #allocation21 [shape = 's32[]', space=sflag, size = 0x4, offset = 0, fixed_abs, tag = 'sflag constant byte address 0x0 - dummy sync flag']
  %s0 = inlined_call_operand.hbm [shape: bf16[64,128], index: 0, kind: input, shape index: {}]
  %s1 = inlined_call_operand.hbm [shape: bf16[3,128,128], index: 1, kind: input, shape index: {}]
  %s2 = inlined_call_operand.hbm [shape: f32[3,1,128], index: 2, kind: input, shape index: {}]
  %s3 = inlined_call_operand.hbm [shape: f32[3,1,128], index: 3, kind: input, shape index: {}]
  %s4 = inlined_call_operand.vmem [shape: f32[3,1,128], index: 4, kind: input, shape index: {}]
  %s5 = inlined_call_operand.hbm [shape: s8[64,64], index: 5, kind: input, shape index: {}]
  %s6 = inlined_call_operand.hbm [shape: f32[64,128], index: 6, kind: output, shape index: {}]
  %s7 = sld [smem:[#allocation0]]
  $region83: #{tpu_custom_call.1} parent=0
    _
  %s9 = ssub.s32 1, %s7
  %s10 = scalar_select 0, %s9, %s7
  $region1: #{tpu_custom_call.1} parent=0
    #allocation7 [shape = 'u8[65536]{0}', space=vmem, size = 0x10000, scoped, tag = 'input window, operand 1']
    #allocation8 [shape = 's32[2]{0}', space=sflag, size = 0x8, scoped, tag = 'scoped memory for tpu_custom_call.1']
    #allocation9 [shape = 'u8[1024]{0}', space=vmem, size = 0x400, scoped, tag = 'input window, operand 2']
    #allocation10 [shape = 's32[2]{0}', space=sflag, size = 0x8, scoped, tag = 'scoped memory for tpu_custom_call.1']
    #allocation11 [shape = 'u8[1024]{0}', space=vmem, size = 0x400, scoped, tag = 'input window, operand 3']
    #allocation12 [shape = 'u8[8192]{0}', space=vmem, size = 0x2000, scoped, tag = 'input window, operand 5, single buffered']
    #allocation13 [shape = 's32[1]{0}', space=sflag, size = 0x4, scoped, tag = 'scoped memory for tpu_custom_call.1']
    %11 = vsyncpa [#allocation8], 0
    %s12 = scalar_lea.sflag [#allocation8], 1
    %13 = vsyncpa %s12, 0
    %14 = vsyncpa [#allocation10], 0
    %s15 = scalar_lea.sflag [#allocation10], 1
    %16 = vsyncpa %s15, 0
    %17 = vsyncpa [#allocation13], 0
    loop: start=0, step=1, limit=4
    $region2: #{tpu_custom_call.1} parent=1 // loop_pre_header
      _
    $region3: #{tpu_custom_call.1} parent=1 // loop_header
      %s19 = sphi 0, %s23
      %p20 = scmp.ge.s32.totalorder %s19, 4
      %s25 = sphi 0, %s35
      %s26 = sphi 0, %s31
      %s27 = sphi 0, %s25
      %s28 = sphi 0, %s26
      %s38 = sphi 0, %s40
      %s41 = sphi 0, %s38
      %s51 = sphi 0, %s41
      %s57 = sphi 0, %s59
      %s60 = sphi 0, %s57
      %s70 = sphi 0, %s60
      %s76 = sphi 0, %s78
      %s79 = sphi 0, %s76
      %s89 = sphi 0, %s79
      %s95 = sphi 0, %s97
      %s98 = sphi 0, %s95
      %s108 = sphi 0, %s98
      %s114 = sphi 0, %s116
      %s117 = sphi 0, %s114
      %s127 = sphi 0, %s117
    $region4: #{tpu_custom_call.1} parent=1 // loop_header_branch
      %22 = sbr.rel (%p20) target = $region8
    $region5: #{tpu_custom_call.1} parent=1 // loop_body
      %s24 = ssub.s32 %s19, 1
      %s29 = sadd.s32 1, %s26
      %p30 = scmp.ge.s32.totalorder %s29, 1
      %s31 = scalar_select %p30, 0, %s29
      %s32 = sadd.s32 1, %s25
      %s33 = scalar_select %p30, %s32, %s25
      %p34 = scmp.ge.s32.totalorder %s33, 3
      %s35 = scalar_select %p34, 0, %s33
      %s36 = ssub.s32 %s25, %s35
      %p37 = scmp.eq.s32.totalorder %s36, 0
      %s39 = sadd.s32 %s38, 1
      %s40 = scalar_select %p37, %s38, %s39
      %p42 = pneg %p37
      %p43 = scmp.eq.s32.totalorder %s19, 2
      %p44 = por %p42, %p43
      %p45 = scmp.ne.s32.totalorder %s38, %s41
      %p46 = scmp.eq.s32.totalorder %s19, 0
      %p47 = por %p45, %p46
      %p48 = scmp.ne.s32.totalorder %s38, %s41
      %p49 = scmp.eq.s32.totalorder %s24, 2
      %p50 = por %p48, %p49
      %p52 = scmp.ne.s32.totalorder %s41, %s51
      %p53 = scmp.eq.s32.totalorder %s24, 0
      %p54 = por %p52, %p53
      %s55 = ssub.s32 %s25, %s35
      %p56 = scmp.eq.s32.totalorder %s55, 0
      %s58 = sadd.s32 %s57, 1
      %s59 = scalar_select %p56, %s57, %s58
      %p61 = pneg %p56
      %p62 = scmp.eq.s32.totalorder %s19, 2
      %p63 = por %p61, %p62
      %p64 = scmp.ne.s32.totalorder %s57, %s60
      %p65 = scmp.eq.s32.totalorder %s19, 0
      %p66 = por %p64, %p65
      %p67 = scmp.ne.s32.totalorder %s57, %s60
      %p68 = scmp.eq.s32.totalorder %s24, 2
      %p69 = por %p67, %p68
      %p71 = scmp.ne.s32.totalorder %s60, %s70
      %p72 = scmp.eq.s32.totalorder %s24, 0
      %p73 = por %p71, %p72
      %s74 = ssub.s32 %s25, %s35
      %p75 = scmp.eq.s32.totalorder %s74, 0
      %s77 = sadd.s32 %s76, 1
      %s78 = scalar_select %p75, %s76, %s77
      %p80 = pneg %p75
      %p81 = scmp.eq.s32.totalorder %s19, 2
      %p82 = por %p80, %p81
      %p83 = scmp.ne.s32.totalorder %s76, %s79
      %p84 = scmp.eq.s32.totalorder %s19, 0
      %p85 = por %p83, %p84
      %p86 = scmp.ne.s32.totalorder %s76, %s79
      %p87 = scmp.eq.s32.totalorder %s24, 2
      %p88 = por %p86, %p87
      %p90 = scmp.ne.s32.totalorder %s79, %s89
      %p91 = scmp.eq.s32.totalorder %s24, 0
      %p92 = por %p90, %p91
      %s93 = ssub.s32 %s25, %s35
      %p94 = scmp.eq.s32.totalorder %s93, 0
      %s96 = sadd.s32 %s95, 1
      %s97 = scalar_select %p94, %s95, %s96
      %p99 = pneg %p94
      %p100 = scmp.eq.s32.totalorder %s19, 2
      %p101 = por %p99, %p100
      %p102 = scmp.ne.s32.totalorder %s95, %s98
      %p103 = scmp.eq.s32.totalorder %s19, 0
      %p104 = por %p102, %p103
      %p105 = scmp.ne.s32.totalorder %s95, %s98
      %p106 = scmp.eq.s32.totalorder %s24, 2
      %p107 = por %p105, %p106
      %p109 = scmp.ne.s32.totalorder %s98, %s108
      %p110 = scmp.eq.s32.totalorder %s24, 0
      %p111 = por %p109, %p110
      %s112 = ssub.s32 %s26, %s31
      %p113 = scmp.eq.s32.totalorder %s112, 0
      %s115 = sadd.s32 %s114, 1
      %s116 = scalar_select %p113, %s114, %s115
      %p118 = pneg %p113
      %p119 = scmp.eq.s32.totalorder %s19, 2
      %p120 = por %p118, %p119
      %p121 = scmp.ne.s32.totalorder %s114, %s117
      %p122 = scmp.eq.s32.totalorder %s19, 0
      %p123 = por %p121, %p122
      %p124 = scmp.ne.s32.totalorder %s114, %s117
      %p125 = scmp.eq.s32.totalorder %s24, 2
      %p126 = por %p124, %p125
      %p128 = scmp.ne.s32.totalorder %s117, %s127
      %p129 = scmp.eq.s32.totalorder %s24, 0
      %p130 = por %p128, %p129
      %p131 = scmp.le.s32.totalorder 1, %s19
      // Predicated region
      $region9: #{tpu_custom_call.1} parent=5 // pred_check
        %p132 = pneg %p131
      $region10: #{tpu_custom_call.1} parent=5 // pred_check_branch
        %134 = sbr.rel (%p132) target = $region12
      $region11: #{tpu_custom_call.1} parent=5 // pred_region
        %s135 = ssub.s32 %s19, 1
        // Predicated region
        $region13: #{tpu_custom_call.1} parent=11 // pred_check
          %p136 = pneg %p130
        $region14: #{tpu_custom_call.1} parent=11 // pred_check_branch
          %138 = sbr.rel (%p136) target = $region16
        $region15: #{tpu_custom_call.1} parent=11 // pred_region
          %s139 = smul.u32 2, %s28
          %141 = vsyncadd [#allocation13], 0
          %s142 = smul.addr %s139, 8
          %s143 = scalar_lea.hbm %s5, %s142
          %s144 = sshll.u32 %s143, 4
          %s145 = int_to_ptr.hbm [resolvable:$true] %s144
          %s146 = sshll.u32 [#allocation12], 4
          %s147 = int_to_ptr.vmem [resolvable:$true] %s146
          %152 = dma.hbm_to_vmem [thread:$0]  %s145, 256, %s147, [#allocation13], 128, 128, 8
        $region16: #{tpu_custom_call.1} parent=11 // pred_fallthru
          _
      $region12: #{tpu_custom_call.1} parent=5 // pred_fallthru
        _
      %p153 = scmp.lt.s32.totalorder %s19, 3
      // Predicated region
      $region17: #{tpu_custom_call.1} parent=5 // pred_check
        %p154 = pneg %p153
      $region18: #{tpu_custom_call.1} parent=5 // pred_check_branch
        %156 = sbr.rel (%p154) target = $region20
      $region19: #{tpu_custom_call.1} parent=5 // pred_region
        // Predicated region
        $region21: #{tpu_custom_call.1} parent=19 // pred_check
          %p157 = pneg %p47
        $region22: #{tpu_custom_call.1} parent=19 // pred_check_branch
          %159 = sbr.rel (%p157) target = $region24
        $region23: #{tpu_custom_call.1} parent=19 // pred_region
          %s160 = sand.u32 %s38, 1
          %s161 = scalar_lea.sflag [#allocation8], %s160
          %s162 = sand.u32 %s38, 1
          %s163 = smul.addr %s162, 64
          %s164 = scalar_lea.vmem [#allocation7], %s163
          %166 = vsyncadd %s161, 0
          %s167 = smul.addr %s25, 16
          %s168 = smul.addr %s167, 4
          %s169 = scalar_lea.hbm %s1, %s168
          %s170 = sshll.u32 %s169, 4
          %s171 = int_to_ptr.hbm [resolvable:$true] %s170
          %s172 = sshll.u32 %s164, 4
          %s173 = int_to_ptr.vmem [resolvable:$true] %s172
          %178 = dma.hbm_to_vmem [thread:$0]  %s171, 1024, %s173, %s161, 64, 64, 4
        $region24: #{tpu_custom_call.1} parent=19 // pred_fallthru
          _
        // Predicated region
        $region25: #{tpu_custom_call.1} parent=19 // pred_check
          %p179 = pneg %p66
        $region26: #{tpu_custom_call.1} parent=19 // pred_check_branch
          %181 = sbr.rel (%p179) target = $region28
        $region27: #{tpu_custom_call.1} parent=19 // pred_region
          %s182 = sand.u32 %s19, 1
          %s183 = scalar_lea.sflag [#allocation10], %s182
          %s184 = sand.u32 %s57, 1
          %s185 = scalar_lea.vmem [#allocation9], %s184
          %187 = vsyncadd %s183, 0
          %s188 = scalar_lea.hbm %s2, %s25
          %s190 = sshll.u32 %s188, 4
          %s191 = int_to_ptr.hbm [resolvable:$true] %s190
          %s192 = sshll.u32 %s185, 4
          %s193 = int_to_ptr.vmem [resolvable:$true] %s192
          %195 = dma.hbm_to_vmem [thread:$0]  %s191, 16, %s193, %s183
        $region28: #{tpu_custom_call.1} parent=19 // pred_fallthru
          _
        // Predicated region
        $region29: #{tpu_custom_call.1} parent=19 // pred_check
          %p196 = pneg %p85
        $region30: #{tpu_custom_call.1} parent=19 // pred_check_branch
          %198 = sbr.rel (%p196) target = $region32
        $region31: #{tpu_custom_call.1} parent=19 // pred_region
          %s199 = sand.u32 %s19, 1
          %s200 = scalar_lea.sflag [#allocation10], %s199
          %s201 = sand.u32 %s76, 1
          %s202 = scalar_lea.vmem [#allocation11], %s201
          %204 = vsyncadd %s200, 0
          %s205 = scalar_lea.hbm %s3, %s25
          %s207 = sshll.u32 %s205, 4
          %s208 = int_to_ptr.hbm [resolvable:$true] %s207
          %s209 = sshll.u32 %s202, 4
          %s210 = int_to_ptr.vmem [resolvable:$true] %s209
          %212 = dma.hbm_to_vmem [thread:$0]  %s208, 16, %s210, %s200
        $region32: #{tpu_custom_call.1} parent=19 // pred_fallthru
          _
        // Predicated region
        $region33: #{tpu_custom_call.1} parent=19 // pred_check
          %p213 = pneg %p104
        $region34: #{tpu_custom_call.1} parent=19 // pred_check_branch
          %215 = sbr.rel (%p213) target = $region36
        $region35: #{tpu_custom_call.1} parent=19 // pred_region
          %p216 = scmp.lt.s32.totalorder %s25, 2
          %s217 = scalar_select %p216, %s25, 2
          %s218 = scalar_lea.vmem %s4, %s217
        $region36: #{tpu_custom_call.1} parent=19 // pred_fallthru
          _
      $region20: #{tpu_custom_call.1} parent=5 // pred_fallthru
        _
      %p219 = scmp.le.s32.totalorder 1, %s19
      // Predicated region
      $region37: #{tpu_custom_call.1} parent=5 // pred_check
        %p220 = pneg %p219
      $region38: #{tpu_custom_call.1} parent=5 // pred_check_branch
        %222 = sbr.rel (%p220) target = $region40
      $region39: #{tpu_custom_call.1} parent=5 // pred_region
        %s223 = ssub.s32 %s19, 1
        %s224 = sand.u32 %s41, 1
        %s225 = scalar_lea.sflag [#allocation8], %s224
        %s226 = sand.u32 %s41, 1
        %s227 = smul.addr %s226, 64
        %s228 = scalar_lea.vmem [#allocation7], %s227
        // Predicated region
        $region41: #{tpu_custom_call.1} parent=39 // pred_check
          %p229 = pneg %p54
        $region42: #{tpu_custom_call.1} parent=39 // pred_check_branch
          %231 = sbr.rel (%p229) target = $region44
        $region43: #{tpu_custom_call.1} parent=39 // pred_region
          %233 = dma.done %s225, 1024
        $region44: #{tpu_custom_call.1} parent=39 // pred_fallthru
          _
        %s234 = sand.u32 %s24, 1
        %s235 = scalar_lea.sflag [#allocation10], %s234
        %s236 = sand.u32 %s60, 1
        %s237 = scalar_lea.vmem [#allocation9], %s236
        // Predicated region
        $region45: #{tpu_custom_call.1} parent=39 // pred_check
          %p238 = pneg %p73
        $region46: #{tpu_custom_call.1} parent=39 // pred_check_branch
          %240 = sbr.rel (%p238) target = $region48
        $region47: #{tpu_custom_call.1} parent=39 // pred_region
          %242 = dma.done %s235, 16
        $region48: #{tpu_custom_call.1} parent=39 // pred_fallthru
          _
        %s243 = sand.u32 %s24, 1
        %s244 = scalar_lea.sflag [#allocation10], %s243
        %s245 = sand.u32 %s79, 1
        %s246 = scalar_lea.vmem [#allocation11], %s245
        // Predicated region
        $region49: #{tpu_custom_call.1} parent=39 // pred_check
          %p247 = pneg %p92
        $region50: #{tpu_custom_call.1} parent=39 // pred_check_branch
          %249 = sbr.rel (%p247) target = $region52
        $region51: #{tpu_custom_call.1} parent=39 // pred_region
          %251 = dma.done %s244, 16
        $region52: #{tpu_custom_call.1} parent=39 // pred_fallthru
          _
        // Predicated region
        $region53: #{tpu_custom_call.1} parent=39 // pred_check
          %p252 = pneg %p130
        $region54: #{tpu_custom_call.1} parent=39 // pred_check_branch
          %254 = sbr.rel (%p252) target = $region56
        $region55: #{tpu_custom_call.1} parent=39 // pred_region
          %256 = dma.done [#allocation13], 256
        $region56: #{tpu_custom_call.1} parent=39 // pred_fallthru
          _
        %s257 = sand.u32 %s41, 1
        %s258 = scalar_lea.sflag [#allocation8], %s257
        %s259 = sand.u32 %s41, 1
        %s260 = smul.addr %s259, 64
        %s261 = scalar_lea.vmem [#allocation7], %s260
        %p262 = pneg %p54
        %p263 = pneg %p50
        %s264 = sand.u32 %s24, 1
        %s265 = scalar_lea.sflag [#allocation10], %s264
        %s266 = sand.u32 %s60, 1
        %s267 = scalar_lea.vmem [#allocation9], %s266
        %p268 = pneg %p73
        %p269 = pneg %p69
        %s270 = sand.u32 %s24, 1
        %s271 = scalar_lea.sflag [#allocation10], %s270
        %s272 = sand.u32 %s79, 1
        %s273 = scalar_lea.vmem [#allocation11], %s272
        %p274 = pneg %p92
        %p275 = pneg %p88
        %p276 = scmp.lt.s32.totalorder %s27, 2
        %s277 = scalar_select %p276, %s27, 2
        %s278 = scalar_lea.vmem %s4, %s277
        %p279 = pneg %p111
        %p280 = pneg %p107
        %p281 = pneg %p130
        %p282 = pneg %p126
        %p283 = scmp.lt.s32.totalorder %s27, 2
        %s284 = scalar_select %p283, %s27, 2
        %s285 = scalar_lea.vmem %s4, %s284
        %s286 = smul.u32 2, %s28
        %p290 = scmp.eq.s32.totalorder %s27, 0
        %p291 = scmp.eq.s32.totalorder %s28, 0
        %p292 = pnand %p290, %p291
        %p293 = pneg %p292
        // Predicated region
        $region57: #{tpu_custom_call.1} parent=39 // pred_check
          _
        $region58: #{tpu_custom_call.1} parent=39 // pred_check_branch
          %295 = sbr.rel (%p292) target = $region60
        $region59: #{tpu_custom_call.1} parent=39 // pred_region
          $region61: #{tpu_custom_call.1} parent=59
            #allocation14 [shape = 's32[1]{0}', space=sflag, size = 0x4, scoped, tag = 'scoped memory for tpu_custom_call.1']
            // Predicated region
            $region62: #{tpu_custom_call.1} parent=61 // pred_check
              _
            $region63: #{tpu_custom_call.1} parent=61 // pred_check_branch
              %297 = sbr.rel target = $region65
            $region64: #{tpu_custom_call.1} parent=61 // pred_region
              %298 = sst [smem:[#allocation17]] [#allocation16]
              %299 = sst [smem:[#allocation18]] [#allocation15]
            $region65: #{tpu_custom_call.1} parent=61 // pred_fallthru
              _
            %301 = shalt.err (0)
            %s303 = sshll.u32 %s0, 4
            %s304 = int_to_ptr.hbm [resolvable:$true] %s303
            %s305 = sshll.u32 [#allocation2], 4
            %s306 = int_to_ptr.vmem [resolvable:$true] %s305
            %308 = dma.hbm_to_vmem [thread:$0]  %s304, 512, %s306, [#allocation14]
            %s309 = smul.u32 4, 8
            %s310 = smul.u32 %s309, 1
            %s311 = sshll.u32 %s310, 4
            %312 = dma.done [#allocation14], %s311
        $region60: #{tpu_custom_call.1} parent=39 // pred_fallthru
          _
        // Predicated region
        $region66: #{tpu_custom_call.1} parent=39 // pred_check
          %p313 = pneg %p291
        $region67: #{tpu_custom_call.1} parent=39 // pred_check_branch
          %315 = sbr.rel (%p313) target = $region69
        $region68: #{tpu_custom_call.1} parent=39 // pred_region
          %v316 = vld [vmem:[#allocation2] sm:$0xf]
          %v317 = vld [vmem:[#allocation2 + $0x4] sm:$0xf]
          %v318 = vld [vmem:[#allocation2 + $0x8] sm:$0xf]
          %v319 = vld [vmem:[#allocation2 + $0xc] sm:$0xf]
          %v320 = vld [vmem:[#allocation2 + $0x10] sm:$0xf]
          %v321 = vld [vmem:[#allocation2 + $0x14] sm:$0xf]
          %v322 = vld [vmem:[#allocation2 + $0x18] sm:$0xf]
          %v323 = vld [vmem:[#allocation2 + $0x1c] sm:$0xf]
          %v324 = vld [vmem:[%s228] sm:$0xf]
          %v325 = vld [vmem:[%s228 + $0x4] sm:$0xf]
          %v326 = vld [vmem:[%s228 + $0x8] sm:$0xf]
          %v327 = vld [vmem:[%s228 + $0xc] sm:$0xf]
          %v328 = vld [vmem:[%s228 + $0x10] sm:$0xf]
          %v329 = vld [vmem:[%s228 + $0x14] sm:$0xf]
          %v330 = vld [vmem:[%s228 + $0x18] sm:$0xf]
          %v331 = vld [vmem:[%s228 + $0x1c] sm:$0xf]
          %v332 = vld [vmem:[%s228 + $0x20] sm:$0xf]
          %v333 = vld [vmem:[%s228 + $0x24] sm:$0xf]
          %v334 = vld [vmem:[%s228 + $0x28] sm:$0xf]
          %v335 = vld [vmem:[%s228 + $0x2c] sm:$0xf]
          %v336 = vld [vmem:[%s228 + $0x30] sm:$0xf]
          %v337 = vld [vmem:[%s228 + $0x34] sm:$0xf]
          %v338 = vld [vmem:[%s228 + $0x38] sm:$0xf]
          %v339 = vld [vmem:[%s228 + $0x3c] sm:$0xf]
          %v348 = vunpack.c.l.b16 %v316
          %v349 = vunpack.c.l.b16 %v317
          %v350 = vunpack.c.l.b16 %v318
          %v351 = vunpack.c.l.b16 %v319
          %v352 = vunpack.c.l.b16 %v320
          %v353 = vunpack.c.l.b16 %v321
          %v354 = vunpack.c.l.b16 %v322
          %v355 = vunpack.c.l.b16 %v323
          %v356 = vpack.c.b16 %v349, %v348
          %v357 = vpack.c.b16 %v351, %v350
          %v358 = vpack.c.b16 %v353, %v352
          %v359 = vpack.c.b16 %v355, %v354
          %v380 = vunpack.c.l.b16 %v324
          %v381 = vunpack.c.l.b16 %v325
          %v382 = vunpack.c.l.b16 %v326
          %v383 = vunpack.c.l.b16 %v327
          %v384 = vunpack.c.l.b16 %v328
          %v385 = vunpack.c.l.b16 %v329
          %v386 = vunpack.c.l.b16 %v330
          %v387 = vunpack.c.l.b16 %v331
          %v388 = vunpack.c.l.b16 %v332
          %v389 = vunpack.c.l.b16 %v333
          %v390 = vunpack.c.l.b16 %v334
          %v391 = vunpack.c.l.b16 %v335
          %v392 = vunpack.c.l.b16 %v336
          %v393 = vunpack.c.l.b16 %v337
          %v394 = vunpack.c.l.b16 %v338
          %v395 = vunpack.c.l.b16 %v339
          %v396 = vpack.c.b16 %v381, %v380
          %v397 = vpack.c.b16 %v383, %v382
          %v398 = vpack.c.b16 %v385, %v384
          %v399 = vpack.c.b16 %v387, %v386
          %v400 = vpack.c.b16 %v389, %v388
          %v401 = vpack.c.b16 %v391, %v390
          %v402 = vpack.c.b16 %v393, %v392
          %v403 = vpack.c.b16 %v395, %v394
          %412 = vmatpush.bf16.msra.mxu0 %v403
          %413 = vmatpush.bf16.msra.mxu0 %v402
          %414 = vmatpush.bf16.msra.mxu0 %v401
          %415 = vmatpush.bf16.msra.mxu0 %v400
          %416 = vmatpush.bf16.msra.mxu0 %v399
          %417 = vmatpush.bf16.msra.mxu0 %v398
          %418 = vmatpush.bf16.msra.mxu0 %v397
          %419 = vmatpush.bf16.msra.mxu0 %v396
          %420 = vmatmul.bf16.gmra.mxu0 %v356
          %v421 = vpop.f32.mrf.mxu0
          %v422 = vadd.f32 0.0, %v421
          %v423 = vpop.f32.mrf.mxu0
          %v424 = vadd.f32 0.0, %v423
          %425 = vmatmul.bf16.gmra.mxu0 %v357
          %v426 = vpop.f32.mrf.mxu0
          %v427 = vadd.f32 0.0, %v426
          %v428 = vpop.f32.mrf.mxu0
          %v429 = vadd.f32 0.0, %v428
          %430 = vmatmul.bf16.gmra.mxu0 %v358
          %v431 = vpop.f32.mrf.mxu0
          %v432 = vadd.f32 0.0, %v431
          %v433 = vpop.f32.mrf.mxu0
          %v434 = vadd.f32 0.0, %v433
          %435 = vmatmul.bf16.gmra.mxu0 %v359
          %v436 = vpop.f32.mrf.mxu0
          %v437 = vadd.f32 0.0, %v436
          %v438 = vpop.f32.mrf.mxu0
          %v439 = vadd.f32 0.0, %v438
          %440 = vdwg.mxu0
          %v441 = vpack.c.bf16 %v422, %v422
          %v442 = vpack.c.bf16 %v424, %v424
          %v443 = vpack.c.bf16 %v427, %v427
          %v444 = vpack.c.bf16 %v429, %v429
          %v445 = vpack.c.bf16 %v432, %v432
          %v446 = vpack.c.bf16 %v434, %v434
          %v447 = vpack.c.bf16 %v437, %v437
          %v448 = vpack.c.bf16 %v439, %v439
          %449 = vst [vmem:[#allocation3] sm:$0xf] %v441
          %450 = vst [vmem:[#allocation3 + $0x4] sm:$0xf] %v442
          %451 = vst [vmem:[#allocation3 + $0x8] sm:$0xf] %v443
          %452 = vst [vmem:[#allocation3 + $0xc] sm:$0xf] %v444
          %453 = vst [vmem:[#allocation3 + $0x10] sm:$0xf] %v445
          %454 = vst [vmem:[#allocation3 + $0x14] sm:$0xf] %v446
          %455 = vst [vmem:[#allocation3 + $0x18] sm:$0xf] %v447
          %456 = vst [vmem:[#allocation3 + $0x1c] sm:$0xf] %v448
          %v457 = vld [vmem:[%s237] sm:$0x1]
          %458 = vmatpush.xpose.msra.mxu0 0.0
          %459 = vmatpush.xpose.msra.mxu0 0.0
          %460 = vmatpush.xpose.msra.mxu0 0.0
          %461 = vmatpush.xpose.msra.mxu0 0.0
          %462 = vmatpush.xpose.msra.mxu0 0.0
          %463 = vmatpush.xpose.msra.mxu0 0.0
          %464 = vmatpush.xpose.msra.mxu0 0.0
          %465 = vmatpush.xpose.msra.mxu0 0.0
          %466 = vmatpush.xpose.msra.mxu0 %v439
          %467 = vmatpush.xpose.msra.mxu0 %v437
          %468 = vmatpush.xpose.msra.mxu0 %v434
          %469 = vmatpush.xpose.msra.mxu0 %v432
          %470 = vmatpush.xpose.msra.mxu0 %v429
          %471 = vmatpush.xpose.msra.mxu0 %v427
          %472 = vmatpush.xpose.msra.mxu0 %v424
          %473 = vmatpush.xpose.msra.mxu0 %v422
          %474 = vmatmul.f32.gmra.mxu0 %v457
          %v475 = vpop.f32.mrf.mxu0
          %v476 = vadd.f32 0.0, %v475
          %477 = vdwg.mxu0
          %vm478 = vcmask 516096
          %479 = vst.msk [vmem:[#allocation4] sm:$0x1] %vm478, %v476
          %v480 = vld [vmem:[%s246] sm:$0x1]
          %v482 = vperm.slane %v480, 0
          %v484 = vmul.f32 %v422, %v482
          %v485 = vmul.f32 %v424, %v482
          %v486 = vmul.f32 %v427, %v482
          %v487 = vmul.f32 %v429, %v482
          %v488 = vmul.f32 %v432, %v482
          %v489 = vmul.f32 %v434, %v482
          %v490 = vmul.f32 %v437, %v482
          %v491 = vmul.f32 %v439, %v482
          %492 = vadd.xlane.f32.xlu0 %v484
          %v493 = vpop.xlane.xlu0 %492
          %494 = vadd.xlane.f32.xlu0 %v485
          %v495 = vpop.xlane.xlu0 %494
          %496 = vadd.xlane.f32.xlu0 %v486
          %v497 = vpop.xlane.xlu0 %496
          %498 = vadd.xlane.f32.xlu0 %v487
          %v499 = vpop.xlane.xlu0 %498
          %500 = vadd.xlane.f32.xlu0 %v488
          %v501 = vpop.xlane.xlu0 %500
          %502 = vadd.xlane.f32.xlu0 %v489
          %v503 = vpop.xlane.xlu0 %502
          %504 = vadd.xlane.f32.xlu0 %v490
          %v505 = vpop.xlane.xlu0 %504
          %506 = vadd.xlane.f32.xlu0 %v491
          %v507 = vpop.xlane.xlu0 %506
          %vm508 = vcmask 7168
          %509 = vst.msk [vmem:[#allocation5] sm:$0xff] %vm508, %v493
          %510 = vst.msk [vmem:[#allocation5 + $0x8] sm:$0xff] %vm508, %v495
          %511 = vst.msk [vmem:[#allocation5 + $0x10] sm:$0xff] %vm508, %v497
          %512 = vst.msk [vmem:[#allocation5 + $0x18] sm:$0xff] %vm508, %v499
          %513 = vst.msk [vmem:[#allocation5 + $0x20] sm:$0xff] %vm508, %v501
          %514 = vst.msk [vmem:[#allocation5 + $0x28] sm:$0xff] %vm508, %v503
          %515 = vst.msk [vmem:[#allocation5 + $0x30] sm:$0xff] %vm508, %v505
          %516 = vst.msk [vmem:[#allocation5 + $0x38] sm:$0xff] %vm508, %v507
        $region69: #{tpu_custom_call.1} parent=39 // pred_fallthru
          _
        %s517 = smul.u32 %s28, 64
        %s518 = scalar_lea.vmem [#allocation5], %s517
        %v519 = vld [vmem:[%s518] sm:$0xff]
        %v520 = vld [vmem:[%s518 + $0x8] sm:$0xff]
        %v521 = vld [vmem:[%s518 + $0x10] sm:$0xff]
        %v522 = vld [vmem:[%s518 + $0x18] sm:$0xff]
        %v523 = vld [vmem:[%s518 + $0x20] sm:$0xff]
        %v524 = vld [vmem:[%s518 + $0x28] sm:$0xff]
        %v525 = vld [vmem:[%s518 + $0x30] sm:$0xff]
        %v526 = vld [vmem:[%s518 + $0x38] sm:$0xff]
        %v527 = vld [vmem:[#allocation4] sm:$0x1]
        %529 = vset.pattern.permute.xlu0 0
        %530 = vperm.xlu0 %529, %v519
        %v531 = vpop.permute.xlu0 %530
        %534 = vset.pattern.permute.xlu0 0
        %535 = vperm.xlu0 %534, %v520
        %v536 = vpop.permute.xlu0 %535
        %539 = vset.pattern.permute.xlu0 0
        %540 = vperm.xlu0 %539, %v521
        %v541 = vpop.permute.xlu0 %540
        %544 = vset.pattern.permute.xlu0 0
        %545 = vperm.xlu0 %544, %v522
        %v546 = vpop.permute.xlu0 %545
        %549 = vset.pattern.permute.xlu0 0
        %550 = vperm.xlu0 %549, %v523
        %v551 = vpop.permute.xlu0 %550
        %554 = vset.pattern.permute.xlu0 0
        %555 = vperm.xlu0 %554, %v524
        %v556 = vpop.permute.xlu0 %555
        %559 = vset.pattern.permute.xlu0 0
        %560 = vperm.xlu0 %559, %v525
        %v561 = vpop.permute.xlu0 %560
        %564 = vset.pattern.permute.xlu0 0
        %565 = vperm.xlu0 %564, %v526
        %v566 = vpop.permute.xlu0 %565
        %v569 = vperm.slane %v527, 0
        %v571 = vadd.f32 %v531, %v569
        %v572 = vadd.f32 %v536, %v569
        %v573 = vadd.f32 %v541, %v569
        %v574 = vadd.f32 %v546, %v569
        %v575 = vadd.f32 %v551, %v569
        %v576 = vadd.f32 %v556, %v569
        %v577 = vadd.f32 %v561, %v569
        %v578 = vadd.f32 %v566, %v569
        %vm579 = vcmp.gt.f32.partialorder %v571, 0.0
        %vm580 = vcmp.gt.f32.partialorder %v572, 0.0
        %vm581 = vcmp.gt.f32.partialorder %v573, 0.0
        %vm582 = vcmp.gt.f32.partialorder %v574, 0.0
        %vm583 = vcmp.gt.f32.partialorder %v575, 0.0
        %vm584 = vcmp.gt.f32.partialorder %v576, 0.0
        %vm585 = vcmp.gt.f32.partialorder %v577, 0.0
        %vm586 = vcmp.gt.f32.partialorder %v578, 0.0
        %v587 = vmul.f32 %v571, 0.2
        %v588 = vmul.f32 %v572, 0.2
        %v589 = vmul.f32 %v573, 0.2
        %v590 = vmul.f32 %v574, 0.2
        %v591 = vmul.f32 %v575, 0.2
        %v592 = vmul.f32 %v576, 0.2
        %v593 = vmul.f32 %v577, 0.2
        %v594 = vmul.f32 %v578, 0.2
        %v595 = vsel %vm579, %v571, %v587
        %v596 = vsel %vm580, %v572, %v588
        %v597 = vsel %vm581, %v573, %v589
        %v598 = vsel %vm582, %v574, %v590
        %v599 = vsel %vm583, %v575, %v591
        %v600 = vsel %vm584, %v576, %v592
        %v601 = vsel %vm585, %v577, %v593
        %v602 = vsel %vm586, %v578, %v594
        %v603 = vld [vmem:[#allocation12] sm:$0xff]
        %v604 = vld [vmem:[#allocation12 + $0x8] sm:$0xff]
        %vm605 = vnez %v603
        %vm606 = vnez %v604
        %v607 = vsel %vm605, 16843009, 0
        %v608 = vsel %vm606, 16843009, 0
        %v609 = vunpack.c.0.s8 %v607
        %v610 = vunpack.c.1.s8 %v607
        %v611 = vunpack.c.2.s8 %v607
        %v612 = vunpack.c.3.s8 %v607
        %v613 = vunpack.c.0.s8 %v608
        %v614 = vunpack.c.1.s8 %v608
        %v615 = vunpack.c.2.s8 %v608
        %v616 = vunpack.c.3.s8 %v608
        %v617 = vpack.c.b16 %v609, %v609
        %v618 = vpack.c.b8 %v617, %v617
        %v619 = vpack.c.b16 %v610, %v610
        %v620 = vpack.c.b8 %v619, %v619
        %v621 = vpack.c.b16 %v611, %v611
        %v622 = vpack.c.b8 %v621, %v621
        %v623 = vpack.c.b16 %v612, %v612
        %v624 = vpack.c.b8 %v623, %v623
        %v625 = vpack.c.b16 %v613, %v613
        %v626 = vpack.c.b8 %v625, %v625
        %v627 = vpack.c.b16 %v614, %v614
        %v628 = vpack.c.b8 %v627, %v627
        %v629 = vpack.c.b16 %v615, %v615
        %v630 = vpack.c.b8 %v629, %v629
        %v631 = vpack.c.b16 %v616, %v616
        %v632 = vpack.c.b8 %v631, %v631
        %vm633 = vnez %v618
        %vm634 = vnez %v620
        %vm635 = vnez %v622
        %vm636 = vnez %v624
        %vm637 = vnez %v626
        %vm638 = vnez %v628
        %vm639 = vnez %v630
        %vm640 = vnez %v632
        %v641 = vsel %vm633, 16843009, 0
        %v642 = vsel %vm634, 16843009, 0
        %v643 = vsel %vm635, 16843009, 0
        %v644 = vsel %vm636, 16843009, 0
        %v645 = vsel %vm637, 16843009, 0
        %v646 = vsel %vm638, 16843009, 0
        %v647 = vsel %vm639, 16843009, 0
        %v648 = vsel %vm640, 16843009, 0
        %v649 = vunpack.c.0.s8 %v641
        %v650 = vunpack.c.0.s8 %v642
        %v651 = vunpack.c.0.s8 %v643
        %v652 = vunpack.c.0.s8 %v644
        %v653 = vunpack.c.0.s8 %v645
        %v654 = vunpack.c.0.s8 %v646
        %v655 = vunpack.c.0.s8 %v647
        %v656 = vunpack.c.0.s8 %v648
        %vm657 = vcmp.ne.s32.totalorder %v649, 0
        %vm658 = vcmp.ne.s32.totalorder %v650, 0
        %vm659 = vcmp.ne.s32.totalorder %v651, 0
        %vm660 = vcmp.ne.s32.totalorder %v652, 0
        %vm661 = vcmp.ne.s32.totalorder %v653, 0
        %vm662 = vcmp.ne.s32.totalorder %v654, 0
        %vm663 = vcmp.ne.s32.totalorder %v655, 0
        %vm664 = vcmp.ne.s32.totalorder %v656, 0
        %v665 = vsel %vm657, %v595, -1e+30
        %v666 = vsel %vm658, %v596, -1e+30
        %v667 = vsel %vm659, %v597, -1e+30
        %v668 = vsel %vm660, %v598, -1e+30
        %v669 = vsel %vm661, %v599, -1e+30
        %v670 = vsel %vm662, %v600, -1e+30
        %v671 = vsel %vm663, %v601, -1e+30
        %v672 = vsel %vm664, %v602, -1e+30
        %vm673 = vcmask 523264
        %v674 = vsel %vm673, %v665, -inf
        %675 = vmax.xlane.f32.xlu0 %v674
        %v676 = vpop.xlane.xlu0 %675
        %v677 = vsel %vm673, %v666, -inf
        %678 = vmax.xlane.f32.xlu0 %v677
        %v679 = vpop.xlane.xlu0 %678
        %v680 = vsel %vm673, %v667, -inf
        %681 = vmax.xlane.f32.xlu0 %v680
        %v682 = vpop.xlane.xlu0 %681
        %v683 = vsel %vm673, %v668, -inf
        %684 = vmax.xlane.f32.xlu0 %v683
        %v685 = vpop.xlane.xlu0 %684
        %v686 = vsel %vm673, %v669, -inf
        %687 = vmax.xlane.f32.xlu0 %v686
        %v688 = vpop.xlane.xlu0 %687
        %v689 = vsel %vm673, %v670, -inf
        %690 = vmax.xlane.f32.xlu0 %v689
        %v691 = vpop.xlane.xlu0 %690
        %v692 = vsel %vm673, %v671, -inf
        %693 = vmax.xlane.f32.xlu0 %v692
        %v694 = vpop.xlane.xlu0 %693
        %v695 = vsel %vm673, %v672, -inf
        %696 = vmax.xlane.f32.xlu0 %v695
        %v697 = vpop.xlane.xlu0 %696
        %v698 = vsub.f32 %v665, %v676
        %v699 = vsub.f32 %v666, %v679
        %v700 = vsub.f32 %v667, %v682
        %v701 = vsub.f32 %v668, %v685
        %v702 = vsub.f32 %v669, %v688
        %v703 = vsub.f32 %v670, %v691
        %v704 = vsub.f32 %v671, %v694
        %v705 = vsub.f32 %v672, %v697
        %v706 = vmul.f32 %v698, 1.442695
        %v707 = vpow.pop %v706
        %v708 = vmul.f32 %v699, 1.442695
        %v709 = vpow.pop %v708
        %v710 = vmul.f32 %v700, 1.442695
        %v711 = vpow.pop %v710
        %v712 = vmul.f32 %v701, 1.442695
        %v713 = vpow.pop %v712
        %v714 = vmul.f32 %v702, 1.442695
        %v715 = vpow.pop %v714
        %v716 = vmul.f32 %v703, 1.442695
        %v717 = vpow.pop %v716
        %v718 = vmul.f32 %v704, 1.442695
        %v719 = vpow.pop %v718
        %v720 = vmul.f32 %v705, 1.442695
        %v721 = vpow.pop %v720
        %v722 = vsel %vm673, %v707, 0.0
        %723 = vadd.xlane.f32.xlu0 %v722
        %v724 = vpop.xlane.xlu0 %723
        %v725 = vsel %vm673, %v709, 0.0
        %726 = vadd.xlane.f32.xlu0 %v725
        %v727 = vpop.xlane.xlu0 %726
        %v728 = vsel %vm673, %v711, 0.0
        %729 = vadd.xlane.f32.xlu0 %v728
        %v730 = vpop.xlane.xlu0 %729
        %v731 = vsel %vm673, %v713, 0.0
        %732 = vadd.xlane.f32.xlu0 %v731
        %v733 = vpop.xlane.xlu0 %732
        %v734 = vsel %vm673, %v715, 0.0
        %735 = vadd.xlane.f32.xlu0 %v734
        %v736 = vpop.xlane.xlu0 %735
        %v737 = vsel %vm673, %v717, 0.0
        %738 = vadd.xlane.f32.xlu0 %v737
        %v739 = vpop.xlane.xlu0 %738
        %v740 = vsel %vm673, %v719, 0.0
        %741 = vadd.xlane.f32.xlu0 %v740
        %v742 = vpop.xlane.xlu0 %741
        %v743 = vsel %vm673, %v721, 0.0
        %744 = vadd.xlane.f32.xlu0 %v743
        %v745 = vpop.xlane.xlu0 %744
        %v746 = vpack.c.bf16 %v709, %v707
        %v747 = vpack.c.bf16 %v713, %v711
        %v748 = vpack.c.bf16 %v717, %v715
        %v749 = vpack.c.bf16 %v721, %v719
        %v750 = vld [vmem:[#allocation3] sm:$0xf]
        %v751 = vld [vmem:[#allocation3 + $0x4] sm:$0xf]
        %v752 = vld [vmem:[#allocation3 + $0x8] sm:$0xf]
        %v753 = vld [vmem:[#allocation3 + $0xc] sm:$0xf]
        %v754 = vld [vmem:[#allocation3 + $0x10] sm:$0xf]
        %v755 = vld [vmem:[#allocation3 + $0x14] sm:$0xf]
        %v756 = vld [vmem:[#allocation3 + $0x18] sm:$0xf]
        %v757 = vld [vmem:[#allocation3 + $0x1c] sm:$0xf]
        %v766 = vunpack.c.l.b16 %v750
        %v767 = vunpack.c.l.b16 %v751
        %v768 = vunpack.c.l.b16 %v752
        %v769 = vunpack.c.l.b16 %v753
        %v770 = vunpack.c.l.b16 %v754
        %v771 = vunpack.c.l.b16 %v755
        %v772 = vunpack.c.l.b16 %v756
        %v773 = vunpack.c.l.b16 %v757
        %v774 = vpack.c.b16 %v767, %v766
        %v775 = vpack.c.b16 %v769, %v768
        %v776 = vpack.c.b16 %v771, %v770
        %v777 = vpack.c.b16 %v773, %v772
        %v783 = vsel %vm673, %v746, 0
        %v786 = vsel %vm673, %v747, 0
        %v789 = vsel %vm673, %v748, 0
        %v792 = vsel %vm673, %v749, 0
        %794 = vmatpush.bf16.msra.mxu0 0
        %795 = vmatpush.bf16.msra.mxu0 0
        %796 = vmatpush.bf16.msra.mxu0 0
        %797 = vmatpush.bf16.msra.mxu0 0
        %798 = vmatpush.bf16.msra.mxu0 %v777
        %799 = vmatpush.bf16.msra.mxu0 %v776
        %800 = vmatpush.bf16.msra.mxu0 %v775
        %801 = vmatpush.bf16.msra.mxu0 %v774
        %802 = vmatmul.bf16.gmra.mxu0 %v783
        %v803 = vpop.f32.mrf.mxu0
        %v804 = vadd.f32 0.0, %v803
        %v805 = vpop.f32.mrf.mxu0
        %v806 = vadd.f32 0.0, %v805
        %807 = vmatmul.bf16.gmra.mxu0 %v786
        %v808 = vpop.f32.mrf.mxu0
        %v809 = vadd.f32 0.0, %v808
        %v810 = vpop.f32.mrf.mxu0
        %v811 = vadd.f32 0.0, %v810
        %812 = vmatmul.bf16.gmra.mxu0 %v789
        %v813 = vpop.f32.mrf.mxu0
        %v814 = vadd.f32 0.0, %v813
        %v815 = vpop.f32.mrf.mxu0
        %v816 = vadd.f32 0.0, %v815
        %817 = vmatmul.bf16.gmra.mxu0 %v792
        %v818 = vpop.f32.mrf.mxu0
        %v819 = vadd.f32 0.0, %v818
        %v820 = vpop.f32.mrf.mxu0
        %v821 = vadd.f32 0.0, %v820
        %822 = vdwg.mxu0
        %v823 = vrcp.pop %v724
        %v824 = vrcp.pop %v727
        %v825 = vrcp.pop %v730
        %v826 = vrcp.pop %v733
        %v827 = vrcp.pop %v736
        %v828 = vrcp.pop %v739
        %v829 = vrcp.pop %v742
        %v830 = vrcp.pop %v745
        %v831 = vmul.f32 %v804, %v823
        %v832 = vmul.f32 %v806, %v824
        %v833 = vmul.f32 %v809, %v825
        %v834 = vmul.f32 %v811, %v826
        %v835 = vmul.f32 %v814, %v827
        %v836 = vmul.f32 %v816, %v828
        %v837 = vmul.f32 %v819, %v829
        %v838 = vmul.f32 %v821, %v830
        %v839 = vld [vmem:[%s285] sm:$0x1]
        %v841 = vperm.slane %v839, 0
        %v843 = vadd.f32 %v831, %v841
        %v844 = vadd.f32 %v832, %v841
        %v845 = vadd.f32 %v833, %v841
        %v846 = vadd.f32 %v834, %v841
        %v847 = vadd.f32 %v835, %v841
        %v848 = vadd.f32 %v836, %v841
        %v849 = vadd.f32 %v837, %v841
        %v850 = vadd.f32 %v838, %v841
        %p851 = scmp.lt.s32.totalorder %s27, 2
        // Predicated region
        $region70: #{tpu_custom_call.1} parent=39 // pred_check
          %p852 = pneg %p851
        $region71: #{tpu_custom_call.1} parent=39 // pred_check_branch
          %854 = sbr.rel (%p852) target = $region73
        $region72: #{tpu_custom_call.1} parent=39 // pred_region
          %v855 = vmax.f32 %v843, 0.0
          %v856 = vmax.f32 %v844, 0.0
          %v857 = vmax.f32 %v845, 0.0
          %v858 = vmax.f32 %v846, 0.0
          %v859 = vmax.f32 %v847, 0.0
          %v860 = vmax.f32 %v848, 0.0
          %v861 = vmax.f32 %v849, 0.0
          %v862 = vmax.f32 %v850, 0.0
          %v863 = vpack.c.bf16 %v855, %v855
          %v864 = vpack.c.bf16 %v856, %v856
          %v865 = vpack.c.bf16 %v857, %v857
          %v866 = vpack.c.bf16 %v858, %v858
          %v867 = vpack.c.bf16 %v859, %v859
          %v868 = vpack.c.bf16 %v860, %v860
          %v869 = vpack.c.bf16 %v861, %v861
          %v870 = vpack.c.bf16 %v862, %v862
          %s871 = sshra.s32 %s517, 3
          %s872 = sand.u32 %s517, 7
          %s873 = smul.addr %s871, 4
          %s874 = scalar_lea.vmem [#allocation2], %s873
          %875 = vst [vmem:[%s874] sm:$0xf] %v863
          %876 = vst [vmem:[%s874 + $0x4] sm:$0xf] %v864
          %877 = vst [vmem:[%s874 + $0x8] sm:$0xf] %v865
          %878 = vst [vmem:[%s874 + $0xc] sm:$0xf] %v866
          %879 = vst [vmem:[%s874 + $0x10] sm:$0xf] %v867
          %880 = vst [vmem:[%s874 + $0x14] sm:$0xf] %v868
          %881 = vst [vmem:[%s874 + $0x18] sm:$0xf] %v869
          %882 = vst [vmem:[%s874 + $0x1c] sm:$0xf] %v870
        $region73: #{tpu_custom_call.1} parent=39 // pred_fallthru
          _
        %p883 = scmp.eq.s32.totalorder %s27, 2
        // Predicated region
        $region74: #{tpu_custom_call.1} parent=39 // pred_check
          %p884 = pneg %p883
        $region75: #{tpu_custom_call.1} parent=39 // pred_check_branch
          %886 = sbr.rel (%p884) target = $region77
        $region76: #{tpu_custom_call.1} parent=39 // pred_region
          %887 = vst [vmem:[#allocation6] sm:$0xff] %v843
          %888 = vst [vmem:[#allocation6 + $0x8] sm:$0xff] %v844
          %889 = vst [vmem:[#allocation6 + $0x10] sm:$0xff] %v845
          %890 = vst [vmem:[#allocation6 + $0x18] sm:$0xff] %v846
          %891 = vst [vmem:[#allocation6 + $0x20] sm:$0xff] %v847
          %892 = vst [vmem:[#allocation6 + $0x28] sm:$0xff] %v848
          %893 = vst [vmem:[#allocation6 + $0x30] sm:$0xff] %v849
          %894 = vst [vmem:[#allocation6 + $0x38] sm:$0xff] %v850
          $region78: #{tpu_custom_call.1} parent=76
            #allocation19 [shape = 's32[1]{0}', space=sflag, size = 0x4, scoped, tag = 'scoped memory for tpu_custom_call.1']
            %s895 = scalar_lea.hbm %s6, %s517
            // Predicated region
            $region79: #{tpu_custom_call.1} parent=78 // pred_check
              _
            $region80: #{tpu_custom_call.1} parent=78 // pred_check_branch
              %897 = sbr.rel target = $region82
            $region81: #{tpu_custom_call.1} parent=78 // pred_region
              %898 = sst [smem:[#allocation17]] [#allocation21]
              %899 = sst [smem:[#allocation18]] [#allocation20]
            $region82: #{tpu_custom_call.1} parent=78 // pred_fallthru
              _
            %901 = shalt.err (0)
            %s903 = sshll.u32 [#allocation6], 4
            %s904 = int_to_ptr.vmem [resolvable:$true] %s903
            %s905 = sshll.u32 %s895, 4
            %s906 = int_to_ptr.hbm [resolvable:$true] %s905
            %908 = dma.vmem_to_hbm [thread:$0]  %s904, 1024, %s906, [#allocation19]
            %s909 = smul.u32 64, 1
            %s910 = sshll.u32 %s909, 4
            %911 = dma.done [#allocation19], %s910
        $region77: #{tpu_custom_call.1} parent=39 // pred_fallthru
          _
      $region40: #{tpu_custom_call.1} parent=5 // pred_fallthru
        _
    $region6: #{tpu_custom_call.1} parent=1 // loop_footer
      %s23 = sadd.s32 1, %s19
    $region7: #{tpu_custom_call.1} parent=1 // loop_footer_branch
      %18 = sbr.rel target = $region3
    $region8: #{tpu_custom_call.1} parent=1 // loop_exit
      _
    %912 = vsyncpa [#allocation8], 1
    %s913 = scalar_lea.sflag [#allocation8], 1
    %914 = vsyncpa %s913, 1
    %915 = vsyncpa [#allocation10], 1
    %s916 = scalar_lea.sflag [#allocation10], 1
    %917 = vsyncpa %s916, 1
    %918 = vsyncpa [#allocation13], 1

</llo_original>
